<compile_context>
chip_gen: v6e
topology: v6e:2x2x1
jax: 0.10.0
libtpu: 0.0.40
codegen_flags: <defaults>
</compile_context>

<pallas_src>
import jax
import jax.numpy as jnp
import numpy as np
from jax.experimental import pallas as pl
from jax.experimental.pallas import tpu as pltpu


# ---------------------------------------------------------------------------
# Fused Pallas kernel: ComplexBN(affine) + ReLU + 1x1 complex conv
# ---------------------------------------------------------------------------
def _transition_dense_kernel(x_ref, bn_ref, w_ref, o_ref):
    # x_ref : (Nb, C,  HW)  activations, channels on sublanes, H*W on lanes (f32)
    # bn_ref: (C, 3)        [a_self, a_cross, offset] per real channel (f32)
    # w_ref : (Co, C)       block complex weight [[Wr, -Wi], [Wi, Wr]] (bf16)
    # o_ref : (Nb, Co, HW)
    Nb, C, _ = x_ref.shape

    bn = bn_ref[...]                   # (C, 3)  loaded once per grid step
    a_self = bn[:, 0:1]                # (C, 1)  multiplies own half
    a_cross = bn[:, 1:2]               # (C, 1)  multiplies partner (rolled) half
    off = bn[:, 2:3]                   # (C, 1)
    w = w_ref[...]                     # (Co, C) bf16, resident across the per-b loop

    for b in range(Nb):                # static unroll, Nb is small
        xb = x_ref[b]                  # (C, HW) f32
        # partner half via sublane roll on the XLU (real<->imag swap, since shift = C/2)
        xb_swap = pltpu.roll(xb, shift=C // 2, axis=0)
        # folded ComplexBN affine + CReLU, all in f32 on the VPU
        hb = jnp.maximum(a_self * xb + a_cross * xb_swap + off, 0.0)
        # 1x1 complex conv == one MXU matmul (bf16 inputs, f32 accumulation)
        out = jnp.dot(w, hb.astype(jnp.bfloat16),
                      preferred_element_type=jnp.float32)      # (Co, HW)
        o_ref[b] = out.astype(o_ref.dtype)


def _pick_batch_block(N):
    # Keep grid >= 2 (both v7x TCs fed, each with pipelining headroom) while
    # amortising per-step overhead.  Nb <= 16 keeps double-buffered VMEM ~8.5 MiB.
    for cand in (16, 8, 4, 2):
        if N % cand == 0 and N // cand >= 2:
            return cand
    return 1


def transition_dense_forward(x_nchw, params):
    """x_nchw: (N, 2*Cc_in, H, W)  ->  (N, 2*Cc_out, H, W)."""
    bn_affine = params["bn_affine"]          # (C, 3)  f32
    w_block = params["w_block"]              # (Co, C) bf16
    N, C, H, W = x_nchw.shape
    Co = w_block.shape[0]
    HW = H * W

    Nb = _pick_batch_block(N)

    # metadata-only reshape (contiguous trailing dims) -> lane-dense last axis
    x2 = x_nchw.reshape(N, C, HW)

    out = pl.pallas_call(
        _transition_dense_kernel,
        out_shape=jax.ShapeDtypeStruct((N, Co, HW), x_nchw.dtype),
        grid_spec=pltpu.PrefetchScalarGridSpec(
            num_scalar_prefetch=0,
            grid=(N // Nb,),                                       # Nb batch elems / step
            in_specs=[
                pl.BlockSpec((Nb, C, HW), lambda n: (n, 0, 0)),    # activations
                pl.BlockSpec((C, 3), lambda n: (0, 0)),            # BN affine (constant -> DMA'd once)
                pl.BlockSpec((Co, C), lambda n: (0, 0)),           # weight    (constant -> DMA'd once)
            ],
            out_specs=pl.BlockSpec((Nb, Co, HW), lambda n: (n, 0, 0)),
        ),
        compiler_params=pltpu.CompilerParams(
            dimension_semantics=("parallel",)),                    # megacore on v7x
    )(x2, bn_affine, w_block)
    return out.reshape(N, Co, H, W)


transition_dense_forward = jax.jit(transition_dense_forward)


# ---------------------------------------------------------------------------
# Parameter construction + folding (deterministic, in-script)
# ---------------------------------------------------------------------------
def _fold_complex_bn(p, eps):
    """Fold eval-mode ComplexBN (mean + 2x2 whitening + gamma/beta) into a per-channel affine."""
    a = p["Vrr"] + eps
    d = p["Vii"] + eps
    b = p["Vri"]
    s = jnp.sqrt(a * d - b * b)
    t = jnp.sqrt(a + d + 2.0 * s)
    inv = 1.0 / (s * t)
    Wrr = (d + s) * inv                    # V^{-1/2} = [[Wrr, Wri], [Wri, Wii]]
    Wii = (a + s) * inv
    Wri = -b * inv

    A_rr = p["g_rr"] * Wrr + p["g_ri"] * Wri       # A = gamma @ V^{-1/2}
    A_ri = p["g_rr"] * Wri + p["g_ri"] * Wii
    A_ir = p["g_ri"] * Wrr + p["g_ii"] * Wri
    A_ii = p["g_ri"] * Wri + p["g_ii"] * Wii
    off_r = p["beta_r"] - (A_rr * p["mu_r"] + A_ri * p["mu_i"])
    off_i = p["beta_i"] - (A_ir * p["mu_r"] + A_ii * p["mu_i"])

    # Layout chosen so the kernel's roll-based form works directly:
    #   real rows: [coef on own half (x_r), coef on rolled half (x_i), offset]
    #   imag rows: [coef on own half (x_i), coef on rolled half (x_r), offset]
    top = jnp.stack([A_rr, A_ri, off_r], axis=1)
    bot = jnp.stack([A_ii, A_ir, off_i], axis=1)
    return jnp.concatenate([top, bot], axis=0).astype(jnp.float32)   # (2*Cc, 3)


def init_transition_dense_params(key, num_input_features, num_output_features, eps=1e-4):
    Cc_in, Cc_out = num_input_features, num_output_features
    ks = jax.random.split(key, 12)

    raw = {
        # ComplexBN running statistics (eval mode) + learnable gamma/beta
        "mu_r": 0.1 * jax.random.normal(ks[0], (Cc_in,), jnp.float32),
        "mu_i": 0.1 * jax.random.normal(ks[1], (Cc_in,), jnp.float32),
        "Vrr": 0.5 + jax.random.uniform(ks[2], (Cc_in,), jnp.float32),
        "Vii": 0.5 + jax.random.uniform(ks[3], (Cc_in,), jnp.float32),
        "g_rr": (1.0 / np.sqrt(2.0)) + 0.05 * jax.random.normal(ks[5], (Cc_in,), jnp.float32),
        "g_ii": (1.0 / np.sqrt(2.0)) + 0.05 * jax.random.normal(ks[6], (Cc_in,), jnp.float32),
        "g_ri": 0.05 * jax.random.normal(ks[7], (Cc_in,), jnp.float32),
        "beta_r": 0.05 * jax.random.normal(ks[8], (Cc_in,), jnp.float32),
        "beta_i": 0.05 * jax.random.normal(ks[9], (Cc_in,), jnp.float32),
    }
    # keep the 2x2 covariance SPD
    raw["Vri"] = (0.3 * (jax.random.uniform(ks[4], (Cc_in,), jnp.float32) - 0.5)
                  * jnp.sqrt(raw["Vrr"] * raw["Vii"]))

    # ComplexConv 1x1 weights (bias=False).
    # TODO(synk): original uses Rayleigh 'complex'/'he' init with seed=2018.
    fan_in = Cc_in
    std = (1.0 / (2.0 * fan_in)) ** 0.5
    raw["Wr"] = std * jax.random.normal(ks[10], (Cc_out, Cc_in), jnp.float32)
    raw["Wi"] = std * jax.random.normal(ks[11], (Cc_out, Cc_in), jnp.float32)

    # block weight [[Wr, -Wi], [Wi, Wr]] : (2*Cc_out, 2*Cc_in), shipped as bf16 for the MXU
    top = jnp.concatenate([raw["Wr"], -raw["Wi"]], axis=1)
    bot = jnp.concatenate([raw["Wi"], raw["Wr"]], axis=1)
    w_block = jnp.concatenate([top, bot], axis=0).astype(jnp.bfloat16)

    return {"raw": raw, "bn_affine": _fold_complex_bn(raw, eps), "w_block": w_block,
            "eps": eps}


# ---------------------------------------------------------------------------
# Pure-JAX reference (independent math in f32, for correctness check)
# ---------------------------------------------------------------------------
def transition_dense_ref(x_nchw, params):
    p = params["raw"]
    eps = params["eps"]
    N, C, H, W = x_nchw.shape
    Cc = C // 2
    bc = lambda v: v[None, :, None, None]

    xr, xi = x_nchw[:, :Cc], x_nchw[:, Cc:]
    cr = xr - bc(p["mu_r"])
    ci = xi - bc(p["mu_i"])

    a = p["Vrr"] + eps
    d = p["Vii"] + eps
    b = p["Vri"]
    s = jnp.sqrt(a * d - b * b)
    t = jnp.sqrt(a + d + 2.0 * s)
    inv = 1.0 / (s * t)
    Wrr, Wii, Wri = bc((d + s) * inv), bc((a + s) * inv), bc(-b * inv)

    wr_ = Wrr * cr + Wri * ci
    wi_ = Wri * cr + Wii * ci
    yr = bc(p["g_rr"]) * wr_ + bc(p["g_ri"]) * wi_ + bc(p["beta_r"])
    yi = bc(p["g_ri"]) * wr_ + bc(p["g_ii"]) * wi_ + bc(p["beta_i"])

    hr = jnp.maximum(yr, 0.0)
    hi = jnp.maximum(yi, 0.0)

    Wr, Wi = p["Wr"], p["Wi"]
    out_r = jnp.einsum("oc,nchw->nohw", Wr, hr) - jnp.einsum("oc,nchw->nohw", Wi, hi)
    out_i = jnp.einsum("oc,nchw->nohw", Wi, hr) + jnp.einsum("oc,nchw->nohw", Wr, hi)
    return jnp.concatenate([out_r, out_i], axis=1)


# ---------------------------------------------------------------------------
if __name__ == "__main__":
    key = jax.random.PRNGKey(0)
    kx, kp = jax.random.split(key)

    # TransitionDense(num_input_features=64, num_output_features=64)
    #   -> 128 real input channels, 128 real output channels
    batch, Cc_in, Cc_out, H, W = 2, 64, 64, 16, 16

    x = jax.random.normal(kx, (batch, 2 * Cc_in, H, W), jnp.float32)   # NCHW
    params = init_transition_dense_params(kp, Cc_in, Cc_out)

    out = jax.block_until_ready(transition_dense_forward(x, params))
    ref = jax.block_until_ready(transition_dense_ref(x, params))

    assert out.shape == (batch, 2 * Cc_out, H, W)
    # tolerance covers the intentional bf16-operand / f32-accumulate MXU path
    # (a genuine bug — wrong channel mapping, wrong roll, wrong affine — is O(1) off)
    np.testing.assert_allclose(np.asarray(out), np.asarray(ref), rtol=2e-2, atol=2e-2)

    print("KERNEL_OK")
</pallas_src>

<mosaic_0001>
module attributes {stable_mosaic.version = 11 : i64} {
  func.func @_transition_dense_kernel(%arg0: i32, %arg1: memref<1x128x256xf32, #tpu.memory_space<vmem>>, %arg2: memref<128x3xf32, #tpu.memory_space<vmem>>, %arg3: memref<128x128xbf16, #tpu.memory_space<vmem>>, %arg4: memref<1x128x256xf32, #tpu.memory_space<vmem>>) attributes {dimension_semantics = [#tpu.dimension_semantics<parallel>], iteration_bounds = array<i64: 2>, scalar_prefetch = 0 : i64, scratch_operands = 0 : i64, tpu.core_type = #tpu.core_type<tc>, window_params = [{transform_indices = @transform_0, window_bounds = array<i64: 1, 128, 256>}, {pipeline_mode = #tpu.pipeline_mode<synchronous>, transform_indices = @transform_1, window_bounds = array<i64: 128, 3>}, {pipeline_mode = #tpu.pipeline_mode<synchronous>, transform_indices = @transform_2, window_bounds = array<i64: 128, 128>}, {transform_indices = @transform_3, window_bounds = array<i64: 1, 128, 256>}]} {
    %c0 = arith.constant 0 : index
    %c0_0 = arith.constant 0 : index
    %0 = vector.load %arg2[%c0, %c0_0] : memref<128x3xf32, #tpu.memory_space<vmem>>, vector<128x3xf32>
    %1 = vector.extract_strided_slice %0 {offsets = [0, 0], sizes = [128, 1], strides = [1, 1]} : vector<128x3xf32> to vector<128x1xf32>
    %2 = vector.extract_strided_slice %0 {offsets = [0, 1], sizes = [128, 1], strides = [1, 1]} : vector<128x3xf32> to vector<128x1xf32>
    %3 = vector.extract_strided_slice %0 {offsets = [0, 2], sizes = [128, 1], strides = [1, 1]} : vector<128x3xf32> to vector<128x1xf32>
    %c0_1 = arith.constant 0 : index
    %c0_2 = arith.constant 0 : index
    %4 = vector.load %arg3[%c0_1, %c0_2] : memref<128x128xbf16, #tpu.memory_space<vmem>>, vector<128x128xbf16>
    %c0_3 = arith.constant 0 : index
    %c0_4 = arith.constant 0 : index
    %c0_5 = arith.constant 0 : index
    %5 = vector.load %arg1[%c0_3, %c0_4, %c0_5] : memref<1x128x256xf32, #tpu.memory_space<vmem>>, vector<1x128x256xf32>
    %6 = vector.shape_cast %5 : vector<1x128x256xf32> to vector<128x256xf32>
    %c64_i32 = arith.constant 64 : i32
    %7 = tpu.dynamic_rotate %6 by %c64_i32 dim 0 : vector<128x256xf32>, i32 -> vector<128x256xf32>
    %8 = vector.broadcast %1 : vector<128x1xf32> to vector<128x256xf32>
    %9 = arith.mulf %8, %6 : vector<128x256xf32>
    %10 = vector.broadcast %2 : vector<128x1xf32> to vector<128x256xf32>
    %11 = arith.mulf %10, %7 : vector<128x256xf32>
    %12 = arith.addf %9, %11 : vector<128x256xf32>
    %13 = vector.broadcast %3 : vector<128x1xf32> to vector<128x256xf32>
    %14 = arith.addf %12, %13 : vector<128x256xf32>
    %cst = arith.constant 0.000000e+00 : f32
    %15 = vector.broadcast %cst : f32 to vector<128x256xf32>
    %16 = arith.maximumf %14, %15 : vector<128x256xf32>
    %17 = arith.truncf %16 : vector<128x256xf32> to vector<128x256xbf16>
    %cst_6 = arith.constant dense<0.000000e+00> : vector<128x256xf32>
    %18 = tpu.matmul %4, %17, %cst_6 {dimension_numbers = #tpu.dot_dimension_numbers<[1], [0], [0], [1], [0, 0, 1, 1], [], []>} : vector<128x128xbf16>, vector<128x256xbf16>, vector<128x256xf32> -> vector<128x256xf32>
    %c0_7 = arith.constant 0 : index
    %c0_8 = arith.constant 0 : index
    %c0_9 = arith.constant 0 : index
    %19 = vector.load %arg4[%c0_7, %c0_8, %c0_9] : memref<1x128x256xf32, #tpu.memory_space<vmem>>, vector<1x128x256xf32>
    %20 = vector.shape_cast %19 : vector<1x128x256xf32> to vector<128x256xf32>
    %21 = vector.shape_cast %18 : vector<128x256xf32> to vector<1x128x256xf32>
    tpu.vector_store %arg4[%c0_7, %c0_8, %c0_9], %21 {strides = array<i32>} : memref<1x128x256xf32, #tpu.memory_space<vmem>>, vector<1x128x256xf32>,
    return
  }
  func.func @transform_0(%arg0: i32) -> (i32, i32, i32) {
    %c0_i32 = arith.constant 0 : i32
    %c0_i32_0 = arith.constant 0 : i32
    %c0_i32_1 = arith.constant 0 : i32
    return %arg0, %c0_i32, %c0_i32_0 : i32, i32, i32
  }
  func.func @transform_1(%arg0: i32) -> (i32, i32) {
    %c0_i32 = arith.constant 0 : i32
    %c0_i32_0 = arith.constant 0 : i32
    %c0_i32_1 = arith.constant 0 : i32
    return %c0_i32, %c0_i32_0 : i32, i32
  }
  func.func @transform_2(%arg0: i32) -> (i32, i32) {
    %c0_i32 = arith.constant 0 : i32
    %c0_i32_0 = arith.constant 0 : i32
    %c0_i32_1 = arith.constant 0 : i32
    return %c0_i32, %c0_i32_0 : i32, i32
  }
  func.func @transform_3(%arg0: i32) -> (i32, i32, i32) {
    %c0_i32 = arith.constant 0 : i32
    %c0_i32_0 = arith.constant 0 : i32
    %c0_i32_1 = arith.constant 0 : i32
    return %arg0, %c0_i32, %c0_i32_0 : i32, i32, i32
  }
}

</mosaic_0001>

<llo_original>
// kernel: transition_dense_forward.1
$region0: #{transition_dense_forward.1}
  #allocation0 [shape = 'u32[]', space=smem, size = 0x4, offset = 0x4, fixed_abs, tag = 'smem constant byte address 0x4 - core index']
  #allocation1 [shape = 'u32[144,128]{1,0:T(1,128)}', space=vmem, size = 0x12000, scoped, tag = 'internal scratch']
  %s0 = inlined_call_operand.vmem [shape: f32[2,128,256], index: 0, kind: input, shape index: {}]
  %s1 = inlined_call_operand.vmem [shape: f32[128,3], index: 1, kind: input, shape index: {}]
  %s2 = inlined_call_operand.vmem [shape: bf16[128,128], index: 2, kind: input, shape index: {}]
  %s3 = inlined_call_operand.vmem [shape: f32[2,128,256], index: 3, kind: output, shape index: {}]
  %s4 = sld [smem:[#allocation0]]
  $region45: #{transition_dense_forward.1} parent=0
    _
  %s6 = ssub.s32 1, %s4
  %s7 = scalar_select 0, %s6, %s4
  loop: start=0, step=1, limit=4
  $region2: #{transition_dense_forward.1} parent=0 // loop_pre_header
    _
  $region3: #{transition_dense_forward.1} parent=0 // loop_header
    %s9 = sphi 0, %s13
    %p10 = scmp.ge.s32.totalorder %s9, 4
    %s19 = sphi 0, %s21
    %s22 = sphi 0, %s19
    %s23 = sphi 0, %s22
    %s39 = sphi 0, %s23
    %s43 = sphi 0, %s43
    %s45 = sphi 0, %s43
    %s46 = sphi 0, %s45
    %s60 = sphi 0, %s46
    %s64 = sphi 0, %s64
    %s66 = sphi 0, %s64
    %s67 = sphi 0, %s66
    %s81 = sphi 0, %s67
    %s87 = sphi 0, %s89
    %s90 = sphi 0, %s87
    %s91 = sphi 0, %s90
    %s107 = sphi 0, %s91
  $region4: #{transition_dense_forward.1} parent=0 // loop_header_branch
    %12 = sbr.rel (%p10) target = $region8
  $region5: #{transition_dense_forward.1} parent=0 // loop_body
    %s14 = ssub.s32 %s9, 1
    %s15 = ssub.s32 %s9, 2
    %s16 = sadd.s32 %s9, 1
    %s17 = ssub.s32 %s9, %s16
    %p18 = scmp.eq.s32.totalorder %s17, 0
    %s20 = sadd.s32 %s19, 1
    %s21 = scalar_select %p18, %s19, %s20
    %p24 = pneg %p18
    %p25 = scmp.eq.s32.totalorder %s9, 1
    %p26 = por %p24, %p25
    %p27 = scmp.ne.s32.totalorder %s19, %s22
    %p28 = scmp.eq.s32.totalorder %s9, 0
    %p29 = por %p27, %p28
    %p30 = scmp.ne.s32.totalorder %s19, %s22
    %p31 = scmp.eq.s32.totalorder %s14, 1
    %p32 = por %p30, %p31
    %p33 = scmp.ne.s32.totalorder %s22, %s23
    %p34 = scmp.eq.s32.totalorder %s14, 0
    %p35 = por %p33, %p34
    %p36 = scmp.ne.s32.totalorder %s22, %s23
    %p37 = scmp.eq.s32.totalorder %s15, 1
    %p38 = por %p36, %p37
    %p40 = scmp.ne.s32.totalorder %s23, %s39
    %p41 = scmp.eq.s32.totalorder %s15, 0
    %p42 = por %p40, %p41
    %s44 = sadd.s32 %s43, 1
    %p47 = scmp.eq.s32.totalorder %s9, 1
    %p48 = scmp.ne.s32.totalorder %s43, %s45
    %p49 = scmp.eq.s32.totalorder %s9, 0
    %p50 = por %p48, %p49
    %p51 = scmp.ne.s32.totalorder %s43, %s45
    %p52 = scmp.eq.s32.totalorder %s14, 1
    %p53 = por %p51, %p52
    %p54 = scmp.ne.s32.totalorder %s45, %s46
    %p55 = scmp.eq.s32.totalorder %s14, 0
    %p56 = por %p54, %p55
    %p57 = scmp.ne.s32.totalorder %s45, %s46
    %p58 = scmp.eq.s32.totalorder %s15, 1
    %p59 = por %p57, %p58
    %p61 = scmp.ne.s32.totalorder %s46, %s60
    %p62 = scmp.eq.s32.totalorder %s15, 0
    %p63 = por %p61, %p62
    %s65 = sadd.s32 %s64, 1
    %p68 = scmp.eq.s32.totalorder %s9, 1
    %p69 = scmp.ne.s32.totalorder %s64, %s66
    %p70 = scmp.eq.s32.totalorder %s9, 0
    %p71 = por %p69, %p70
    %p72 = scmp.ne.s32.totalorder %s64, %s66
    %p73 = scmp.eq.s32.totalorder %s14, 1
    %p74 = por %p72, %p73
    %p75 = scmp.ne.s32.totalorder %s66, %s67
    %p76 = scmp.eq.s32.totalorder %s14, 0
    %p77 = por %p75, %p76
    %p78 = scmp.ne.s32.totalorder %s66, %s67
    %p79 = scmp.eq.s32.totalorder %s15, 1
    %p80 = por %p78, %p79
    %p82 = scmp.ne.s32.totalorder %s67, %s81
    %p83 = scmp.eq.s32.totalorder %s15, 0
    %p84 = por %p82, %p83
    %s85 = ssub.s32 %s9, %s16
    %p86 = scmp.eq.s32.totalorder %s85, 0
    %s88 = sadd.s32 %s87, 1
    %s89 = scalar_select %p86, %s87, %s88
    %p92 = pneg %p86
    %p93 = scmp.eq.s32.totalorder %s9, 1
    %p94 = por %p92, %p93
    %p95 = scmp.ne.s32.totalorder %s87, %s90
    %p96 = scmp.eq.s32.totalorder %s9, 0
    %p97 = por %p95, %p96
    %p98 = scmp.ne.s32.totalorder %s87, %s90
    %p99 = scmp.eq.s32.totalorder %s14, 1
    %p100 = por %p98, %p99
    %p101 = scmp.ne.s32.totalorder %s90, %s91
    %p102 = scmp.eq.s32.totalorder %s14, 0
    %p103 = por %p101, %p102
    %p104 = scmp.ne.s32.totalorder %s90, %s91
    %p105 = scmp.eq.s32.totalorder %s15, 1
    %p106 = por %p104, %p105
    %p108 = scmp.ne.s32.totalorder %s91, %s107
    %p109 = scmp.eq.s32.totalorder %s15, 0
    %p110 = por %p108, %p109
    %p111 = scmp.le.s32.totalorder 1, %s9
    %p112 = scmp.lt.s32.totalorder %s9, 3
    %p113 = pnand %p111, %p112
    %p114 = pneg %p113
    // Predicated region
    $region9: #{transition_dense_forward.1} parent=5 // pred_check
      _
    $region10: #{transition_dense_forward.1} parent=5 // pred_check_branch
      %116 = sbr.rel (%p113) target = $region12
    $region11: #{transition_dense_forward.1} parent=5 // pred_region
      %s117 = ssub.s32 %s9, 1
      // Predicated region
      $region13: #{transition_dense_forward.1} parent=11 // pred_check
        %p118 = pneg %p56
      $region14: #{transition_dense_forward.1} parent=11 // pred_check_branch
        %120 = sbr.rel (%p118) target = $region16
      $region15: #{transition_dense_forward.1} parent=11 // pred_region
        _
      $region16: #{transition_dense_forward.1} parent=11 // pred_fallthru
        _
      // Predicated region
      $region17: #{transition_dense_forward.1} parent=11 // pred_check
        %p121 = pneg %p77
      $region18: #{transition_dense_forward.1} parent=11 // pred_check_branch
        %123 = sbr.rel (%p121) target = $region20
      $region19: #{transition_dense_forward.1} parent=11 // pred_region
        _
      $region20: #{transition_dense_forward.1} parent=11 // pred_fallthru
        _
    $region12: #{transition_dense_forward.1} parent=5 // pred_fallthru
      _
    %p124 = scmp.lt.s32.totalorder %s9, 2
    // Predicated region
    $region21: #{transition_dense_forward.1} parent=5 // pred_check
      %p125 = pneg %p124
    $region22: #{transition_dense_forward.1} parent=5 // pred_check_branch
      %127 = sbr.rel (%p125) target = $region24
    $region23: #{transition_dense_forward.1} parent=5 // pred_region
      // Predicated region
      $region25: #{transition_dense_forward.1} parent=23 // pred_check
        %p128 = pneg %p29
      $region26: #{transition_dense_forward.1} parent=23 // pred_check_branch
        %130 = sbr.rel (%p128) target = $region28
      $region27: #{transition_dense_forward.1} parent=23 // pred_region
        %p131 = scmp.lt.s32.totalorder %s9, 1
        %s132 = scalar_select %p131, %s9, 1
        %s133 = smul.addr %s132, 32
        %s134 = smul.addr %s133, 8
        %s135 = scalar_lea.vmem %s0, %s134
      $region28: #{transition_dense_forward.1} parent=23 // pred_fallthru
        _
    $region24: #{transition_dense_forward.1} parent=5 // pred_fallthru
      _
    %p136 = scmp.le.s32.totalorder 1, %s9
    %p137 = scmp.lt.s32.totalorder %s9, 3
    %p138 = pnand %p136, %p137
    %p139 = pneg %p138
    // Predicated region
    $region29: #{transition_dense_forward.1} parent=5 // pred_check
      _
    $region30: #{transition_dense_forward.1} parent=5 // pred_check_branch
      %141 = sbr.rel (%p138) target = $region32
    $region31: #{transition_dense_forward.1} parent=5 // pred_region
      %s142 = ssub.s32 %s9, 1
      %p143 = scmp.lt.s32.totalorder %s14, 1
      %s144 = scalar_select %p143, %s14, 1
      %s145 = smul.addr %s144, 32
      %s146 = smul.addr %s145, 8
      %s147 = scalar_lea.vmem %s0, %s146
      %p148 = pneg %p35
      %p149 = pneg %p32
      %p150 = pneg %p56
      %p151 = pneg %p53
      %p152 = pneg %p77
      %p153 = pneg %p74
      %p154 = pneg %p103
      %p155 = pneg %p100
      %p156 = scmp.lt.s32.totalorder %s14, 1
      %s157 = scalar_select %p156, %s14, 1
      %s158 = smul.addr %s157, 32
      %s159 = smul.addr %s158, 8
      %s160 = scalar_lea.vmem %s3, %s159
      %p161 = scmp.lt.s32.totalorder %s14, 1
      %s162 = scalar_select %p161, %s14, 1
      %s163 = smul.addr %s162, 32
      %s164 = smul.addr %s163, 8
      %s165 = scalar_lea.vmem %s0, %s164
      %p166 = scmp.lt.s32.totalorder %s14, 1
      %s167 = scalar_select %p166, %s14, 1
      %s168 = smul.addr %s167, 32
      %s169 = smul.addr %s168, 8
      %s170 = scalar_lea.vmem %s3, %s169
      %v172 = vld [vmem:[%s1] sm:$0xff]
      %v173 = vld [vmem:[%s1 + $0x8] sm:$0xff]
      %v174 = vld [vmem:[%s1 + $0x10] sm:$0xff]
      %v175 = vld [vmem:[%s1 + $0x18] sm:$0xff]
      %v176 = vld [vmem:[%s1 + $0x20] sm:$0xff]
      %v177 = vld [vmem:[%s1 + $0x28] sm:$0xff]
      %v178 = vld [vmem:[%s1 + $0x30] sm:$0xff]
      %v179 = vld [vmem:[%s1 + $0x38] sm:$0xff]
      %v180 = vld [vmem:[%s1 + $0x40] sm:$0xff]
      %v181 = vld [vmem:[%s1 + $0x48] sm:$0xff]
      %v182 = vld [vmem:[%s1 + $0x50] sm:$0xff]
      %v183 = vld [vmem:[%s1 + $0x58] sm:$0xff]
      %v184 = vld [vmem:[%s1 + $0x60] sm:$0xff]
      %v185 = vld [vmem:[%s1 + $0x68] sm:$0xff]
      %v186 = vld [vmem:[%s1 + $0x70] sm:$0xff]
      %v187 = vld [vmem:[%s1 + $0x78] sm:$0xff]
      %v188 = vld [vmem:[%s2] sm:$0xf]
      %v189 = vld [vmem:[%s2 + $0x4] sm:$0xf]
      %v190 = vld [vmem:[%s2 + $0x8] sm:$0xf]
      %v191 = vld [vmem:[%s2 + $0xc] sm:$0xf]
      %v192 = vld [vmem:[%s2 + $0x10] sm:$0xf]
      %v193 = vld [vmem:[%s2 + $0x14] sm:$0xf]
      %v194 = vld [vmem:[%s2 + $0x18] sm:$0xf]
      %v195 = vld [vmem:[%s2 + $0x1c] sm:$0xf]
      %v196 = vld [vmem:[%s2 + $0x20] sm:$0xf]
      %v197 = vld [vmem:[%s2 + $0x24] sm:$0xf]
      %v198 = vld [vmem:[%s2 + $0x28] sm:$0xf]
      %v199 = vld [vmem:[%s2 + $0x2c] sm:$0xf]
      %v200 = vld [vmem:[%s2 + $0x30] sm:$0xf]
      %v201 = vld [vmem:[%s2 + $0x34] sm:$0xf]
      %v202 = vld [vmem:[%s2 + $0x38] sm:$0xf]
      %v203 = vld [vmem:[%s2 + $0x3c] sm:$0xf]
      %v204 = vld [vmem:[%s165] sm:$0xff]
      %v205 = vld [vmem:[%s165 + $0x8] sm:$0xff]
      %v206 = vld [vmem:[%s165 + $0x10] sm:$0xff]
      %v207 = vld [vmem:[%s165 + $0x18] sm:$0xff]
      %v208 = vld [vmem:[%s165 + $0x20] sm:$0xff]
      %v209 = vld [vmem:[%s165 + $0x28] sm:$0xff]
      %v210 = vld [vmem:[%s165 + $0x30] sm:$0xff]
      %v211 = vld [vmem:[%s165 + $0x38] sm:$0xff]
      %v212 = vld [vmem:[%s165 + $0x40] sm:$0xff]
      %v213 = vld [vmem:[%s165 + $0x48] sm:$0xff]
      %v214 = vld [vmem:[%s165 + $0x50] sm:$0xff]
      %v215 = vld [vmem:[%s165 + $0x58] sm:$0xff]
      %v216 = vld [vmem:[%s165 + $0x60] sm:$0xff]
      %v217 = vld [vmem:[%s165 + $0x68] sm:$0xff]
      %v218 = vld [vmem:[%s165 + $0x70] sm:$0xff]
      %v219 = vld [vmem:[%s165 + $0x78] sm:$0xff]
      %v220 = vld [vmem:[%s165 + $0x80] sm:$0xff]
      %v221 = vld [vmem:[%s165 + $0x88] sm:$0xff]
      %v222 = vld [vmem:[%s165 + $0x90] sm:$0xff]
      %v223 = vld [vmem:[%s165 + $0x98] sm:$0xff]
      %v224 = vld [vmem:[%s165 + $0xa0] sm:$0xff]
      %v225 = vld [vmem:[%s165 + $0xa8] sm:$0xff]
      %v226 = vld [vmem:[%s165 + $0xb0] sm:$0xff]
      %v227 = vld [vmem:[%s165 + $0xb8] sm:$0xff]
      %v228 = vld [vmem:[%s165 + $0xc0] sm:$0xff]
      %v229 = vld [vmem:[%s165 + $0xc8] sm:$0xff]
      %v230 = vld [vmem:[%s165 + $0xd0] sm:$0xff]
      %v231 = vld [vmem:[%s165 + $0xd8] sm:$0xff]
      %v232 = vld [vmem:[%s165 + $0xe0] sm:$0xff]
      %v233 = vld [vmem:[%s165 + $0xe8] sm:$0xff]
      %v234 = vld [vmem:[%s165 + $0xf0] sm:$0xff]
      %v235 = vld [vmem:[%s165 + $0xf8] sm:$0xff]
      %237 = vset.pattern.permute.xlu0 0
      %238 = vperm.xlu0 %237, %v172
      %v239 = vpop.permute.xlu0 %238
      %242 = vset.pattern.permute.xlu0 0
      %243 = vperm.xlu0 %242, %v173
      %v244 = vpop.permute.xlu0 %243
      %247 = vset.pattern.permute.xlu0 0
      %248 = vperm.xlu0 %247, %v174
      %v249 = vpop.permute.xlu0 %248
      %252 = vset.pattern.permute.xlu0 0
      %253 = vperm.xlu0 %252, %v175
      %v254 = vpop.permute.xlu0 %253
      %257 = vset.pattern.permute.xlu0 0
      %258 = vperm.xlu0 %257, %v176
      %v259 = vpop.permute.xlu0 %258
      %262 = vset.pattern.permute.xlu0 0
      %263 = vperm.xlu0 %262, %v177
      %v264 = vpop.permute.xlu0 %263
      %267 = vset.pattern.permute.xlu0 0
      %268 = vperm.xlu0 %267, %v178
      %v269 = vpop.permute.xlu0 %268
      %272 = vset.pattern.permute.xlu0 0
      %273 = vperm.xlu0 %272, %v179
      %v274 = vpop.permute.xlu0 %273
      %277 = vset.pattern.permute.xlu0 0
      %278 = vperm.xlu0 %277, %v180
      %v279 = vpop.permute.xlu0 %278
      %282 = vset.pattern.permute.xlu0 0
      %283 = vperm.xlu0 %282, %v181
      %v284 = vpop.permute.xlu0 %283
      %287 = vset.pattern.permute.xlu0 0
      %288 = vperm.xlu0 %287, %v182
      %v289 = vpop.permute.xlu0 %288
      %292 = vset.pattern.permute.xlu0 0
      %293 = vperm.xlu0 %292, %v183
      %v294 = vpop.permute.xlu0 %293
      %297 = vset.pattern.permute.xlu0 0
      %298 = vperm.xlu0 %297, %v184
      %v299 = vpop.permute.xlu0 %298
      %302 = vset.pattern.permute.xlu0 0
      %303 = vperm.xlu0 %302, %v185
      %v304 = vpop.permute.xlu0 %303
      %307 = vset.pattern.permute.xlu0 0
      %308 = vperm.xlu0 %307, %v186
      %v309 = vpop.permute.xlu0 %308
      %312 = vset.pattern.permute.xlu0 0
      %313 = vperm.xlu0 %312, %v187
      %v314 = vpop.permute.xlu0 %313
      %v316 = vmul.f32 %v239, %v204
      %v317 = vmul.f32 %v239, %v205
      %v318 = vmul.f32 %v244, %v206
      %v319 = vmul.f32 %v244, %v207
      %v320 = vmul.f32 %v249, %v208
      %v321 = vmul.f32 %v249, %v209
      %v322 = vmul.f32 %v254, %v210
      %v323 = vmul.f32 %v254, %v211
      %v324 = vmul.f32 %v259, %v212
      %v325 = vmul.f32 %v259, %v213
      %v326 = vmul.f32 %v264, %v214
      %v327 = vmul.f32 %v264, %v215
      %v328 = vmul.f32 %v269, %v216
      %v329 = vmul.f32 %v269, %v217
      %v330 = vmul.f32 %v274, %v218
      %v331 = vmul.f32 %v274, %v219
      %v332 = vmul.f32 %v279, %v220
      %v333 = vmul.f32 %v279, %v221
      %v334 = vmul.f32 %v284, %v222
      %v335 = vmul.f32 %v284, %v223
      %v336 = vmul.f32 %v289, %v224
      %v337 = vmul.f32 %v289, %v225
      %v338 = vmul.f32 %v294, %v226
      %v339 = vmul.f32 %v294, %v227
      %v340 = vmul.f32 %v299, %v228
      %v341 = vmul.f32 %v299, %v229
      %v342 = vmul.f32 %v304, %v230
      %v343 = vmul.f32 %v304, %v231
      %v344 = vmul.f32 %v309, %v232
      %v345 = vmul.f32 %v309, %v233
      %v346 = vmul.f32 %v314, %v234
      %v347 = vmul.f32 %v314, %v235
      %348 = vset.pattern.permute.xlu0 1
      %349 = vperm.xlu0 %348, %v172
      %v350 = vpop.permute.xlu0 %349
      %352 = vset.pattern.permute.xlu0 1
      %353 = vperm.xlu0 %352, %v173
      %v354 = vpop.permute.xlu0 %353
      %356 = vset.pattern.permute.xlu0 1
      %357 = vperm.xlu0 %356, %v174
      %v358 = vpop.permute.xlu0 %357
      %360 = vset.pattern.permute.xlu0 1
      %361 = vperm.xlu0 %360, %v175
      %v362 = vpop.permute.xlu0 %361
      %364 = vset.pattern.permute.xlu0 1
      %365 = vperm.xlu0 %364, %v176
      %v366 = vpop.permute.xlu0 %365
      %368 = vset.pattern.permute.xlu0 1
      %369 = vperm.xlu0 %368, %v177
      %v370 = vpop.permute.xlu0 %369
      %372 = vset.pattern.permute.xlu0 1
      %373 = vperm.xlu0 %372, %v178
      %v374 = vpop.permute.xlu0 %373
      %376 = vset.pattern.permute.xlu0 1
      %377 = vperm.xlu0 %376, %v179
      %v378 = vpop.permute.xlu0 %377
      %380 = vset.pattern.permute.xlu0 1
      %381 = vperm.xlu0 %380, %v180
      %v382 = vpop.permute.xlu0 %381
      %384 = vset.pattern.permute.xlu0 1
      %385 = vperm.xlu0 %384, %v181
      %v386 = vpop.permute.xlu0 %385
      %388 = vset.pattern.permute.xlu0 1
      %389 = vperm.xlu0 %388, %v182
      %v390 = vpop.permute.xlu0 %389
      %392 = vset.pattern.permute.xlu0 1
      %393 = vperm.xlu0 %392, %v183
      %v394 = vpop.permute.xlu0 %393
      %396 = vset.pattern.permute.xlu0 1
      %397 = vperm.xlu0 %396, %v184
      %v398 = vpop.permute.xlu0 %397
      %400 = vset.pattern.permute.xlu0 1
      %401 = vperm.xlu0 %400, %v185
      %v402 = vpop.permute.xlu0 %401
      %404 = vset.pattern.permute.xlu0 1
      %405 = vperm.xlu0 %404, %v186
      %v406 = vpop.permute.xlu0 %405
      %408 = vset.pattern.permute.xlu0 1
      %409 = vperm.xlu0 %408, %v187
      %v410 = vpop.permute.xlu0 %409
      %v412 = vmul.f32 %v350, %v220
      %v413 = vmul.f32 %v350, %v221
      %v414 = vmul.f32 %v354, %v222
      %v415 = vmul.f32 %v354, %v223
      %v416 = vmul.f32 %v358, %v224
      %v417 = vmul.f32 %v358, %v225
      %v418 = vmul.f32 %v362, %v226
      %v419 = vmul.f32 %v362, %v227
      %v420 = vmul.f32 %v366, %v228
      %v421 = vmul.f32 %v366, %v229
      %v422 = vmul.f32 %v370, %v230
      %v423 = vmul.f32 %v370, %v231
      %v424 = vmul.f32 %v374, %v232
      %v425 = vmul.f32 %v374, %v233
      %v426 = vmul.f32 %v378, %v234
      %v427 = vmul.f32 %v378, %v235
      %v428 = vmul.f32 %v382, %v204
      %v429 = vmul.f32 %v382, %v205
      %v430 = vmul.f32 %v386, %v206
      %v431 = vmul.f32 %v386, %v207
      %v432 = vmul.f32 %v390, %v208
      %v433 = vmul.f32 %v390, %v209
      %v434 = vmul.f32 %v394, %v210
      %v435 = vmul.f32 %v394, %v211
      %v436 = vmul.f32 %v398, %v212
      %v437 = vmul.f32 %v398, %v213
      %v438 = vmul.f32 %v402, %v214
      %v439 = vmul.f32 %v402, %v215
      %v440 = vmul.f32 %v406, %v216
      %v441 = vmul.f32 %v406, %v217
      %v442 = vmul.f32 %v410, %v218
      %v443 = vmul.f32 %v410, %v219
      %v444 = vadd.f32 %v316, %v412
      %v445 = vadd.f32 %v317, %v413
      %v446 = vadd.f32 %v318, %v414
      %v447 = vadd.f32 %v319, %v415
      %v448 = vadd.f32 %v320, %v416
      %v449 = vadd.f32 %v321, %v417
      %v450 = vadd.f32 %v322, %v418
      %v451 = vadd.f32 %v323, %v419
      %v452 = vadd.f32 %v324, %v420
      %v453 = vadd.f32 %v325, %v421
      %v454 = vadd.f32 %v326, %v422
      %v455 = vadd.f32 %v327, %v423
      %v456 = vadd.f32 %v328, %v424
      %v457 = vadd.f32 %v329, %v425
      %v458 = vadd.f32 %v330, %v426
      %v459 = vadd.f32 %v331, %v427
      %v460 = vadd.f32 %v332, %v428
      %v461 = vadd.f32 %v333, %v429
      %v462 = vadd.f32 %v334, %v430
      %v463 = vadd.f32 %v335, %v431
      %v464 = vadd.f32 %v336, %v432
      %v465 = vadd.f32 %v337, %v433
      %v466 = vadd.f32 %v338, %v434
      %v467 = vadd.f32 %v339, %v435
      %v468 = vadd.f32 %v340, %v436
      %v469 = vadd.f32 %v341, %v437
      %v470 = vadd.f32 %v342, %v438
      %v471 = vadd.f32 %v343, %v439
      %v472 = vadd.f32 %v344, %v440
      %v473 = vadd.f32 %v345, %v441
      %v474 = vadd.f32 %v346, %v442
      %v475 = vadd.f32 %v347, %v443
      %476 = vset.pattern.permute.xlu0 2
      %477 = vperm.xlu0 %476, %v172
      %v478 = vpop.permute.xlu0 %477
      %480 = vset.pattern.permute.xlu0 2
      %481 = vperm.xlu0 %480, %v173
      %v482 = vpop.permute.xlu0 %481
      %484 = vset.pattern.permute.xlu0 2
      %485 = vperm.xlu0 %484, %v174
      %v486 = vpop.permute.xlu0 %485
      %488 = vset.pattern.permute.xlu0 2
      %489 = vperm.xlu0 %488, %v175
      %v490 = vpop.permute.xlu0 %489
      %492 = vset.pattern.permute.xlu0 2
      %493 = vperm.xlu0 %492, %v176
      %v494 = vpop.permute.xlu0 %493
      %496 = vset.pattern.permute.xlu0 2
      %497 = vperm.xlu0 %496, %v177
      %v498 = vpop.permute.xlu0 %497
      %500 = vset.pattern.permute.xlu0 2
      %501 = vperm.xlu0 %500, %v178
      %v502 = vpop.permute.xlu0 %501
      %504 = vset.pattern.permute.xlu0 2
      %505 = vperm.xlu0 %504, %v179
      %v506 = vpop.permute.xlu0 %505
      %508 = vset.pattern.permute.xlu0 2
      %509 = vperm.xlu0 %508, %v180
      %v510 = vpop.permute.xlu0 %509
      %512 = vset.pattern.permute.xlu0 2
      %513 = vperm.xlu0 %512, %v181
      %v514 = vpop.permute.xlu0 %513
      %516 = vset.pattern.permute.xlu0 2
      %517 = vperm.xlu0 %516, %v182
      %v518 = vpop.permute.xlu0 %517
      %520 = vset.pattern.permute.xlu0 2
      %521 = vperm.xlu0 %520, %v183
      %v522 = vpop.permute.xlu0 %521
      %524 = vset.pattern.permute.xlu0 2
      %525 = vperm.xlu0 %524, %v184
      %v526 = vpop.permute.xlu0 %525
      %528 = vset.pattern.permute.xlu0 2
      %529 = vperm.xlu0 %528, %v185
      %v530 = vpop.permute.xlu0 %529
      %532 = vset.pattern.permute.xlu0 2
      %533 = vperm.xlu0 %532, %v186
      %v534 = vpop.permute.xlu0 %533
      %536 = vset.pattern.permute.xlu0 2
      %537 = vperm.xlu0 %536, %v187
      %v538 = vpop.permute.xlu0 %537
      %v540 = vadd.f32 %v444, %v478
      %v541 = vadd.f32 %v445, %v478
      %v542 = vadd.f32 %v446, %v482
      %v543 = vadd.f32 %v447, %v482
      %v544 = vadd.f32 %v448, %v486
      %v545 = vadd.f32 %v449, %v486
      %v546 = vadd.f32 %v450, %v490
      %v547 = vadd.f32 %v451, %v490
      %v548 = vadd.f32 %v452, %v494
      %v549 = vadd.f32 %v453, %v494
      %v550 = vadd.f32 %v454, %v498
      %v551 = vadd.f32 %v455, %v498
      %v552 = vadd.f32 %v456, %v502
      %v553 = vadd.f32 %v457, %v502
      %v554 = vadd.f32 %v458, %v506
      %v555 = vadd.f32 %v459, %v506
      %v556 = vadd.f32 %v460, %v510
      %v557 = vadd.f32 %v461, %v510
      %v558 = vadd.f32 %v462, %v514
      %v559 = vadd.f32 %v463, %v514
      %v560 = vadd.f32 %v464, %v518
      %v561 = vadd.f32 %v465, %v518
      %v562 = vadd.f32 %v466, %v522
      %v563 = vadd.f32 %v467, %v522
      %v564 = vadd.f32 %v468, %v526
      %v565 = vadd.f32 %v469, %v526
      %v566 = vadd.f32 %v470, %v530
      %v567 = vadd.f32 %v471, %v530
      %v568 = vadd.f32 %v472, %v534
      %v569 = vadd.f32 %v473, %v534
      %v570 = vadd.f32 %v474, %v538
      %v571 = vadd.f32 %v475, %v538
      %v572 = vmax.f32 %v540, 0.0
      %v573 = vmax.f32 %v541, 0.0
      %v574 = vmax.f32 %v542, 0.0
      %v575 = vmax.f32 %v543, 0.0
      %v576 = vmax.f32 %v544, 0.0
      %v577 = vmax.f32 %v545, 0.0
      %v578 = vmax.f32 %v546, 0.0
      %v579 = vmax.f32 %v547, 0.0
      %v580 = vmax.f32 %v548, 0.0
      %v581 = vmax.f32 %v549, 0.0
      %v582 = vmax.f32 %v550, 0.0
      %v583 = vmax.f32 %v551, 0.0
      %v584 = vmax.f32 %v552, 0.0
      %v585 = vmax.f32 %v553, 0.0
      %v586 = vmax.f32 %v554, 0.0
      %v587 = vmax.f32 %v555, 0.0
      %v588 = vmax.f32 %v556, 0.0
      %v589 = vmax.f32 %v557, 0.0
      %v590 = vmax.f32 %v558, 0.0
      %v591 = vmax.f32 %v559, 0.0
      %v592 = vmax.f32 %v560, 0.0
      %v593 = vmax.f32 %v561, 0.0
      %v594 = vmax.f32 %v562, 0.0
      %v595 = vmax.f32 %v563, 0.0
      %v596 = vmax.f32 %v564, 0.0
      %v597 = vmax.f32 %v565, 0.0
      %v598 = vmax.f32 %v566, 0.0
      %v599 = vmax.f32 %v567, 0.0
      %v600 = vmax.f32 %v568, 0.0
      %v601 = vmax.f32 %v569, 0.0
      %v602 = vmax.f32 %v570, 0.0
      %v603 = vmax.f32 %v571, 0.0
      %v604 = vpack.c.bf16 %v574, %v572
      %v605 = vpack.c.bf16 %v575, %v573
      %v606 = vpack.c.bf16 %v578, %v576
      %v607 = vpack.c.bf16 %v579, %v577
      %v608 = vpack.c.bf16 %v582, %v580
      %v609 = vpack.c.bf16 %v583, %v581
      %v610 = vpack.c.bf16 %v586, %v584
      %v611 = vpack.c.bf16 %v587, %v585
      %v612 = vpack.c.bf16 %v590, %v588
      %v613 = vpack.c.bf16 %v591, %v589
      %v614 = vpack.c.bf16 %v594, %v592
      %v615 = vpack.c.bf16 %v595, %v593
      %v616 = vpack.c.bf16 %v598, %v596
      %v617 = vpack.c.bf16 %v599, %v597
      %v618 = vpack.c.bf16 %v602, %v600
      %v619 = vpack.c.bf16 %v603, %v601
      %v636 = vunpack.c.l.b16 %v188
      %v637 = vunpack.c.l.b16 %v189
      %v638 = vunpack.c.l.b16 %v190
      %v639 = vunpack.c.l.b16 %v191
      %v640 = vunpack.c.l.b16 %v192
      %v641 = vunpack.c.l.b16 %v193
      %v642 = vunpack.c.l.b16 %v194
      %v643 = vunpack.c.l.b16 %v195
      %v644 = vunpack.c.l.b16 %v196
      %v645 = vunpack.c.l.b16 %v197
      %v646 = vunpack.c.l.b16 %v198
      %v647 = vunpack.c.l.b16 %v199
      %v648 = vunpack.c.l.b16 %v200
      %v649 = vunpack.c.l.b16 %v201
      %v650 = vunpack.c.l.b16 %v202
      %v651 = vunpack.c.l.b16 %v203
      %v652 = vpack.c.b16 %v637, %v636
      %v653 = vpack.c.b16 %v639, %v638
      %v654 = vpack.c.b16 %v641, %v640
      %v655 = vpack.c.b16 %v643, %v642
      %v656 = vpack.c.b16 %v645, %v644
      %v657 = vpack.c.b16 %v647, %v646
      %v658 = vpack.c.b16 %v649, %v648
      %v659 = vpack.c.b16 %v651, %v650
      %668 = vmatprep.subr.bf16.mxu0 %v619
      %669 = vmatpush1.bf16.msra.mxu0 %v618
      %670 = vmatprep.subr.bf16.mxu0 %v617
      %671 = vmatpush1.bf16.msra.mxu0 %v616
      %672 = vmatprep.subr.bf16.mxu0 %v615
      %673 = vmatpush1.bf16.msra.mxu0 %v614
      %674 = vmatprep.subr.bf16.mxu0 %v613
      %675 = vmatpush1.bf16.msra.mxu0 %v612
      %676 = vmatprep.subr.bf16.mxu0 %v611
      %677 = vmatpush1.bf16.msra.mxu0 %v610
      %678 = vmatprep.subr.bf16.mxu0 %v609
      %679 = vmatpush1.bf16.msra.mxu0 %v608
      %680 = vmatprep.subr.bf16.mxu0 %v607
      %681 = vmatpush1.bf16.msra.mxu0 %v606
      %682 = vmatprep.subr.bf16.mxu0 %v605
      %683 = vmatpush1.bf16.msra.mxu0 %v604
      %684 = vmatprep.subr.bf16.mxu0 0
      %685 = vmatpush2.bf16.msra.mxu0 0
      %686 = vmatprep.subr.bf16.mxu0 0
      %687 = vmatpush2.bf16.msra.mxu0 0
      %688 = vmatprep.subr.bf16.mxu0 0
      %689 = vmatpush2.bf16.msra.mxu0 0
      %690 = vmatprep.subr.bf16.mxu0 0
      %691 = vmatpush2.bf16.msra.mxu0 0
      %692 = vmatprep.subr.bf16.mxu0 0
      %693 = vmatpush2.bf16.msra.mxu0 0
      %694 = vmatprep.subr.bf16.mxu0 0
      %695 = vmatpush2.bf16.msra.mxu0 0
      %696 = vmatprep.subr.bf16.mxu0 0
      %697 = vmatpush2.bf16.msra.mxu0 0
      %698 = vmatprep.subr.bf16.mxu0 0
      %699 = vmatpush2.bf16.msra.mxu0 0
      %700 = vmatprep.mubr.bf16.mxu0 0
      %701 = vmatmul.mubr.bf16.gmra.mxu0 %v652
      %v702 = vpop.f32.mrf.mxu0
      %v703 = vadd.f32 0.0, %v702
      %v704 = vpop.f32.mrf.mxu0
      %v705 = vadd.f32 0.0, %v704
      %v706 = vpop.f32.mrf.mxu0
      %v707 = vadd.f32 0.0, %v706
      %v708 = vpop.f32.mrf.mxu0
      %v709 = vadd.f32 0.0, %v708
      %710 = vmatprep.mubr.bf16.mxu0 0
      %711 = vmatmul.mubr.bf16.gmra.mxu0 %v653
      %v712 = vpop.f32.mrf.mxu0
      %v713 = vadd.f32 0.0, %v712
      %v714 = vpop.f32.mrf.mxu0
      %v715 = vadd.f32 0.0, %v714
      %v716 = vpop.f32.mrf.mxu0
      %v717 = vadd.f32 0.0, %v716
      %v718 = vpop.f32.mrf.mxu0
      %v719 = vadd.f32 0.0, %v718
      %720 = vmatprep.mubr.bf16.mxu0 0
      %721 = vmatmul.mubr.bf16.gmra.mxu0 %v654
      %v722 = vpop.f32.mrf.mxu0
      %v723 = vadd.f32 0.0, %v722
      %v724 = vpop.f32.mrf.mxu0
      %v725 = vadd.f32 0.0, %v724
      %v726 = vpop.f32.mrf.mxu0
      %v727 = vadd.f32 0.0, %v726
      %v728 = vpop.f32.mrf.mxu0
      %v729 = vadd.f32 0.0, %v728
      %730 = vmatprep.mubr.bf16.mxu0 0
      %731 = vmatmul.mubr.bf16.gmra.mxu0 %v655
      %v732 = vpop.f32.mrf.mxu0
      %v733 = vadd.f32 0.0, %v732
      %v734 = vpop.f32.mrf.mxu0
      %v735 = vadd.f32 0.0, %v734
      %v736 = vpop.f32.mrf.mxu0
      %v737 = vadd.f32 0.0, %v736
      %v738 = vpop.f32.mrf.mxu0
      %v739 = vadd.f32 0.0, %v738
      %740 = vmatprep.mubr.bf16.mxu0 0
      %741 = vmatmul.mubr.bf16.gmra.mxu0 %v656
      %v742 = vpop.f32.mrf.mxu0
      %v743 = vadd.f32 0.0, %v742
      %v744 = vpop.f32.mrf.mxu0
      %v745 = vadd.f32 0.0, %v744
      %v746 = vpop.f32.mrf.mxu0
      %v747 = vadd.f32 0.0, %v746
      %v748 = vpop.f32.mrf.mxu0
      %v749 = vadd.f32 0.0, %v748
      %750 = vmatprep.mubr.bf16.mxu0 0
      %751 = vmatmul.mubr.bf16.gmra.mxu0 %v657
      %v752 = vpop.f32.mrf.mxu0
      %v753 = vadd.f32 0.0, %v752
      %v754 = vpop.f32.mrf.mxu0
      %v755 = vadd.f32 0.0, %v754
      %v756 = vpop.f32.mrf.mxu0
      %v757 = vadd.f32 0.0, %v756
      %v758 = vpop.f32.mrf.mxu0
      %v759 = vadd.f32 0.0, %v758
      %760 = vmatprep.mubr.bf16.mxu0 0
      %761 = vmatmul.mubr.bf16.gmra.mxu0 %v658
      %v762 = vpop.f32.mrf.mxu0
      %v763 = vadd.f32 0.0, %v762
      %v764 = vpop.f32.mrf.mxu0
      %v765 = vadd.f32 0.0, %v764
      %v766 = vpop.f32.mrf.mxu0
      %v767 = vadd.f32 0.0, %v766
      %v768 = vpop.f32.mrf.mxu0
      %v769 = vadd.f32 0.0, %v768
      %770 = vmatprep.mubr.bf16.mxu0 0
      %771 = vmatmul.mubr.bf16.gmra.mxu0 %v659
      %v772 = vpop.f32.mrf.mxu0
      %v773 = vadd.f32 0.0, %v772
      %v774 = vpop.f32.mrf.mxu0
      %v775 = vadd.f32 0.0, %v774
      %v776 = vpop.f32.mrf.mxu0
      %v777 = vadd.f32 0.0, %v776
      %v778 = vpop.f32.mrf.mxu0
      %v779 = vadd.f32 0.0, %v778
      %780 = vdwg.mxu0
      %781 = vst [vmem:[%s170] sm:$0xff] %v703
      %782 = vst [vmem:[%s170 + $0x8] sm:$0xff] %v705
      %783 = vst [vmem:[%s170 + $0x10] sm:$0xff] %v707
      %784 = vst [vmem:[%s170 + $0x18] sm:$0xff] %v709
      %785 = vst [vmem:[%s170 + $0x20] sm:$0xff] %v713
      %786 = vst [vmem:[%s170 + $0x28] sm:$0xff] %v715
      %787 = vst [vmem:[%s170 + $0x30] sm:$0xff] %v717
      %788 = vst [vmem:[%s170 + $0x38] sm:$0xff] %v719
      %789 = vst [vmem:[%s170 + $0x40] sm:$0xff] %v723
      %790 = vst [vmem:[%s170 + $0x48] sm:$0xff] %v725
      %791 = vst [vmem:[%s170 + $0x50] sm:$0xff] %v727
      %792 = vst [vmem:[%s170 + $0x58] sm:$0xff] %v729
      %793 = vst [vmem:[%s170 + $0x60] sm:$0xff] %v733
      %794 = vst [vmem:[%s170 + $0x68] sm:$0xff] %v735
      %795 = vst [vmem:[%s170 + $0x70] sm:$0xff] %v737
      %796 = vst [vmem:[%s170 + $0x78] sm:$0xff] %v739
      %797 = vst [vmem:[%s170 + $0x80] sm:$0xff] %v743
      %798 = vst [vmem:[%s170 + $0x88] sm:$0xff] %v745
      %799 = vst [vmem:[%s170 + $0x90] sm:$0xff] %v747
      %800 = vst [vmem:[%s170 + $0x98] sm:$0xff] %v749
      %801 = vst [vmem:[%s170 + $0xa0] sm:$0xff] %v753
      %802 = vst [vmem:[%s170 + $0xa8] sm:$0xff] %v755
      %803 = vst [vmem:[%s170 + $0xb0] sm:$0xff] %v757
      %804 = vst [vmem:[%s170 + $0xb8] sm:$0xff] %v759
      %805 = vst [vmem:[%s170 + $0xc0] sm:$0xff] %v763
      %806 = vst [vmem:[%s170 + $0xc8] sm:$0xff] %v765
      %807 = vst [vmem:[%s170 + $0xd0] sm:$0xff] %v767
      %808 = vst [vmem:[%s170 + $0xd8] sm:$0xff] %v769
      %809 = vst [vmem:[%s170 + $0xe0] sm:$0xff] %v773
      %810 = vst [vmem:[%s170 + $0xe8] sm:$0xff] %v775
      %811 = vst [vmem:[%s170 + $0xf0] sm:$0xff] %v777
      %812 = vst [vmem:[%s170 + $0xf8] sm:$0xff] %v779
      %p813 = scmp.lt.s32.totalorder %s14, 1
      %s814 = scalar_select %p813, %s14, 1
      %s815 = smul.addr %s814, 32
      %s816 = smul.addr %s815, 8
      %s817 = scalar_lea.vmem %s3, %s816
      // Predicated region
      $region33: #{transition_dense_forward.1} parent=31 // pred_check
        %p818 = pneg %p100
      $region34: #{transition_dense_forward.1} parent=31 // pred_check_branch
        %820 = sbr.rel (%p818) target = $region36
      $region35: #{transition_dense_forward.1} parent=31 // pred_region
        _
      $region36: #{transition_dense_forward.1} parent=31 // pred_fallthru
        _
    $region32: #{transition_dense_forward.1} parent=5 // pred_fallthru
      _
    %p821 = scmp.le.s32.totalorder 2, %s9
    // Predicated region
    $region37: #{transition_dense_forward.1} parent=5 // pred_check
      %p822 = pneg %p821
    $region38: #{transition_dense_forward.1} parent=5 // pred_check_branch
      %824 = sbr.rel (%p822) target = $region40
    $region39: #{transition_dense_forward.1} parent=5 // pred_region
      %s825 = ssub.s32 %s9, 2
      // Predicated region
      $region41: #{transition_dense_forward.1} parent=39 // pred_check
        %p826 = pneg %p106
      $region42: #{transition_dense_forward.1} parent=39 // pred_check_branch
        %828 = sbr.rel (%p826) target = $region44
      $region43: #{transition_dense_forward.1} parent=39 // pred_region
        %p829 = scmp.lt.s32.totalorder %s15, 1
        %s830 = scalar_select %p829, %s15, 1
        %s831 = smul.addr %s830, 32
        %s832 = smul.addr %s831, 8
        %s833 = scalar_lea.vmem %s3, %s832
      $region44: #{transition_dense_forward.1} parent=39 // pred_fallthru
        _
    $region40: #{transition_dense_forward.1} parent=5 // pred_fallthru
      _
  $region6: #{transition_dense_forward.1} parent=0 // loop_footer
    %s13 = sadd.s32 1, %s9
  $region7: #{transition_dense_forward.1} parent=0 // loop_footer_branch
    %8 = sbr.rel target = $region3
  $region8: #{transition_dense_forward.1} parent=0 // loop_exit
    _

</llo_original>
